<compile_context>
chip_gen: v7x
topology: tpu7x:2x2x1
jax: 0.10.0
libtpu: 0.0.40
codegen_flags: <defaults>
</compile_context>

<pallas_src>
import functools

import jax
import jax.numpy as jnp
from jax.experimental import pallas as pl
from jax.experimental.pallas import tpu as pltpu

LN_EPS = 1e-5  # torch.nn.LayerNorm default eps


def fine_seq_kernel(seq_ref, m1_ref, g_ref, beta_ref, out_ref, *,
                    n_layers, d1_true):
    # seq_ref:  (BB, TL, D1p)        batch x seq tile of the sequence
    # m1_ref:   (BB, n_layers, D1p)  precomputed item-Linear outputs (f32)
    # g_ref:    (n_layers, D1p)      LayerNorm gamma (pad lanes are 0)
    # beta_ref: (n_layers, D1p)      LayerNorm beta  (pad lanes are 0)
    # out_ref:  (BB, TL, D1p)
    h = seq_ref[...].astype(jnp.float32)                         # (BB, TL, D1p)
    inv_d1 = 1.0 / float(d1_true)

    # n_layers is small and inherently sequential: unroll statically.
    for i in range(n_layers):
        m1 = m1_ref[:, i:i + 1, :]                                # (BB, 1, D1p)

        # einsum('abc,adc->abd') with d == 1  ->  per-row dot over D1.
        # Pad lanes of h and m1 are zero, so the sum equals the true-D1 dot.
        # (Kept on VPU+XLU; an MXU einsum with N=1 buys little and risks layout churn.)
        gate = jax.nn.sigmoid(jnp.sum(h * m1, axis=-1, keepdims=True))

        # V_masked = gate*h ; dropout(p=0) is identity ; residual add.
        # Fused as h*(1+gate): one fewer full-tensor VPU add per layer.
        # TODO(synk): dropout for drop_prob > 0 not implemented (module default 0.0).
        h = h * (gate + 1.0)

        # LayerNorm over the true D1 width.  Pad lanes of h are zero, so plain
        # sums over D1p divided by d1_true give the correct moments.  Variance
        # as E[h^2]-E[h]^2 keeps the two reductions independent; clamp at 0.
        s1 = jnp.sum(h, axis=-1, keepdims=True) * inv_d1          # E[h]
        s2 = jnp.sum(h * h, axis=-1, keepdims=True) * inv_d1      # E[h^2]
        var = jnp.maximum(s2 - s1 * s1, 0.0)
        h = (h - s1) * jax.lax.rsqrt(var + LN_EPS)
        # gamma/beta pad lanes are 0 => pad lanes of h are re-zeroed here.
        h = (h * g_ref[i:i + 1, :].astype(jnp.float32)
             + beta_ref[i:i + 1, :].astype(jnp.float32))

    out_ref[...] = h.astype(out_ref.dtype)


def _round_up(x, m):
    return ((x + m - 1) // m) * m


def _vmem_capacity_bytes():
    try:
        return int(pltpu.get_tpu_info().vmem_capacity_bytes)
    except Exception:
        return 64 << 20  # conservative fallback (v7x has 64 MiB per TensorCore)


def _choose_tiles(B, L, D1p, in_itemsize, vmem_cap_bytes):
    """Pick (BB, TL) for the (BB, TL, D1p) tile.

    VMEM per tile element: 2x double-buffered input + 2x double-buffered output
    (same dtype) from the pipeline, plus ~3 live f32 working copies of h inside
    the kernel body (gate / LN temporaries); the m1 and gamma/beta blocks are
    negligible by comparison.  Target ~2 MiB of streamed input per step (HBM
    roofline saturates at 1-4 MiB tiles) and never exceed ~60% of VMEM.
    """
    per_elem_bytes = 4 * in_itemsize + 3 * 4
    vmem_tile_elems = int(0.6 * vmem_cap_bytes) // per_elem_bytes
    target_tile_elems = (2 << 20) // in_itemsize
    tile_elems = max(1, min(vmem_tile_elems, target_tile_elems))

    sub = 8 if in_itemsize >= 4 else 16          # sublane alignment for TL
    l_aligned = _round_up(L, sub)
    row_elems = l_aligned * D1p                   # one (1, L, D1p) batch row

    if row_elems <= tile_elems:
        tl = l_aligned
        bb = max(1, min(B, tile_elems // row_elems))
    else:
        bb = 1
        tl = max(sub, (tile_elems // D1p) // sub * sub)
        tl = min(tl, l_aligned)

    # Keep >= 4 grid steps when the problem allows it so both v7x TensorCores
    # get >= 2 pipelined steps each (costs only ~0.35us/step on 1-core chips).
    def n_steps(b_blk, l_blk):
        return -(-B // b_blk) * -(-l_aligned // l_blk)

    while n_steps(bb, tl) < 4 and bb > 1:
        bb = (bb + 1) // 2

    return bb, tl


def fine_seq_forward(seq_input, item_input, W, b, gamma, beta, *,
                     drop_prob=0.0, batch_block=None, seq_block=None):
    """FineSeqLayer forward.

    seq_input: (B, L, D1); item_input: (B, D2); W: (n_layers, D1, D2);
    b / gamma / beta: (n_layers, D1).  Returns (B, L, D1) in seq_input.dtype.
    """
    assert drop_prob == 0.0, "TODO(synk): dropout for drop_prob > 0 not implemented"
    B, L, D1 = seq_input.shape
    n_layers = W.shape[0]

    # Hoist the item Linear: one batched, MXU-efficient matmul in the wrapper.
    # m1[b, i, :] = item_input[b] @ W[i].T + b[i]
    m1 = jnp.einsum('bd,nkd->bnk',
                    item_input.astype(jnp.float32),
                    W.astype(jnp.float32),
                    precision=jax.lax.Precision.HIGHEST) + b.astype(jnp.float32)[None]

    # Lane-pad D1 to a multiple of 128 (unmasked, lane-dense stores).  gamma /
    # beta pad lanes are zero so the pad lanes of h stay exactly zero after
    # every layer; the kernel uses the true D1 as the LayerNorm denominator.
    D1p = _round_up(D1, 128)
    if D1p != D1:
        pad_d = D1p - D1
        seq_w = jnp.pad(seq_input, ((0, 0), (0, 0), (0, pad_d)))
        m1_w = jnp.pad(m1, ((0, 0), (0, 0), (0, pad_d)))
        gamma_w = jnp.pad(gamma, ((0, 0), (0, pad_d)))
        beta_w = jnp.pad(beta, ((0, 0), (0, pad_d)))
    else:
        seq_w, m1_w, gamma_w, beta_w = seq_input, m1, gamma, beta

    in_itemsize = jnp.dtype(seq_input.dtype).itemsize
    vmem_cap = _vmem_capacity_bytes()
    BB, TL = _choose_tiles(B, L, D1p, in_itemsize, vmem_cap)
    if batch_block is not None:
        BB = batch_block
    if seq_block is not None:
        TL = seq_block

    nB, nL = pl.cdiv(B, BB), pl.cdiv(L, TL)
    Bp, Lp = nB * BB, nL * TL
    if (Bp, Lp) != (B, L):
        seq_w = jnp.pad(seq_w, ((0, Bp - B), (0, Lp - L), (0, 0)))
        m1_w = jnp.pad(m1_w, ((0, Bp - B), (0, 0), (0, 0)))

    kernel = functools.partial(fine_seq_kernel, n_layers=n_layers, d1_true=D1)
    out = pl.pallas_call(
        kernel,
        out_shape=jax.ShapeDtypeStruct((Bp, Lp, D1p), seq_input.dtype),
        grid_spec=pltpu.PrefetchScalarGridSpec(
            num_scalar_prefetch=0,
            grid=(nB, nL),
            in_specs=[
                pl.BlockSpec((BB, TL, D1p), lambda bi, li: (bi, li, 0)),
                pl.BlockSpec((BB, n_layers, D1p), lambda bi, li: (bi, 0, 0)),
                pl.BlockSpec((n_layers, D1p), lambda bi, li: (0, 0)),
                pl.BlockSpec((n_layers, D1p), lambda bi, li: (0, 0)),
            ],
            out_specs=pl.BlockSpec((BB, TL, D1p), lambda bi, li: (bi, li, 0)),
        ),
        compiler_params=pltpu.CompilerParams(
            dimension_semantics=("parallel", "parallel"),
            # v7x (64 MiB/TC) -> ~48 MiB; v5e/v6e (128 MiB) -> ~96 MiB.
            vmem_limit_bytes=int(min(0.75 * vmem_cap, 100 << 20)),
        ),
    )(seq_w, m1_w, gamma_w, beta_w)

    if (Bp, Lp, D1p) != (B, L, D1):
        out = out[:B, :L, :D1]
    return out


def fine_seq_reference(seq_input, item_input, W, b, gamma, beta):
    """Pure-JAX reference mirroring the PyTorch forward exactly (f32 math)."""
    h = seq_input.astype(jnp.float32)
    item3 = item_input.astype(jnp.float32)[:, None, :]           # (B, 1, D2)
    n_layers = W.shape[0]
    hp = jax.lax.Precision.HIGHEST
    for i in range(n_layers):
        m1 = jnp.einsum('bod,kd->bok', item3, W[i].astype(jnp.float32),
                        precision=hp) + b[i]                     # (B, 1, D1)
        gate = jax.nn.sigmoid(jnp.einsum('blc,bdc->bld', h, m1,
                                         precision=hp))          # (B, L, 1)
        h = gate * h + h
        mu = jnp.mean(h, axis=-1, keepdims=True)
        var = jnp.mean(jnp.square(h - mu), axis=-1, keepdims=True)
        h = (h - mu) * jax.lax.rsqrt(var + LN_EPS)
        h = h * gamma[i] + beta[i]
    return h.astype(seq_input.dtype)


def _run_case(key, B, L, D1, D2, n_layers):
    k_seq, k_item, k_w, k_b = jax.random.split(key, 4)
    seq_input = jax.random.normal(k_seq, (B, L, D1), jnp.float32)
    item_input = jax.random.normal(k_item, (B, D2), jnp.float32)
    # nn.Linear weight (D1, D2), bias (D1,); nn.LayerNorm gamma=1, beta=0.
    W = 0.1 * jax.random.normal(k_w, (n_layers, D1, D2), jnp.float32)
    b = 0.1 * jax.random.normal(k_b, (n_layers, D1), jnp.float32)
    gamma = jnp.ones((n_layers, D1), jnp.float32)
    beta = jnp.zeros((n_layers, D1), jnp.float32)

    out = fine_seq_forward(seq_input, item_input, W, b, gamma, beta)
    jax.block_until_ready(out)
    ref = fine_seq_reference(seq_input, item_input, W, b, gamma, beta)
    assert out.shape == (B, L, D1)
    assert jnp.allclose(out, ref, atol=1e-4, rtol=1e-4), "mismatch vs reference"


if __name__ == "__main__":
    key = jax.random.PRNGKey(0)
    k0, k1 = jax.random.split(key)

    # in_shape_list = [D1, D2], n_layers = 2 (module defaults), drop_prob = 0.
    # Case 1: lane-dense D1=128 (fast path).
    _run_case(k0, B=8, L=16, D1=128, D2=16, n_layers=2)
    # Case 2: small D1 (32) and ragged L (10) to exercise the lane/seq padding path.
    _run_case(k1, B=4, L=10, D1=32, D2=8, n_layers=2)

    print("KERNEL_OK")
</pallas_src>

<mosaic_0001>
module attributes {stable_mosaic.version = 11 : i64} {
  func.func @fine_seq_kernel(%arg0: i32, %arg1: i32, %arg2: memref<2x16x128xf32, #tpu.memory_space<vmem>>, %arg3: memref<2x2x128xf32, #tpu.memory_space<vmem>>, %arg4: memref<2x128xf32, #tpu.memory_space<vmem>>, %arg5: memref<2x128xf32, #tpu.memory_space<vmem>>, %arg6: memref<2x16x128xf32, #tpu.memory_space<vmem>>) attributes {dimension_semantics = [#tpu.dimension_semantics<parallel>, #tpu.dimension_semantics<parallel>], iteration_bounds = array<i64: 4, 1>, scalar_prefetch = 0 : i64, scratch_operands = 0 : i64, tpu.core_type = #tpu.core_type<tc>, window_params = [{transform_indices = @transform_0, window_bounds = array<i64: 2, 16, 128>}, {transform_indices = @transform_1, window_bounds = array<i64: 2, 2, 128>}, {pipeline_mode = #tpu.pipeline_mode<synchronous>, transform_indices = @transform_2, window_bounds = array<i64: 2, 128>}, {pipeline_mode = #tpu.pipeline_mode<synchronous>, transform_indices = @transform_3, window_bounds = array<i64: 2, 128>}, {transform_indices = @transform_4, window_bounds = array<i64: 2, 16, 128>}]} {
    %c0 = arith.constant 0 : index
    %c0_0 = arith.constant 0 : index
    %c0_1 = arith.constant 0 : index
    %0 = vector.load %arg2[%c0, %c0_0, %c0_1] : memref<2x16x128xf32, #tpu.memory_space<vmem>>, vector<2x16x128xf32>
    %c0_2 = arith.constant 0 : index
    %c0_3 = arith.constant 0 : index
    %c0_4 = arith.constant 0 : index
    %1 = vector.load %arg3[%c0_2, %c0_3, %c0_4] : memref<2x2x128xf32, #tpu.memory_space<vmem>>, vector<2x1x128xf32>
    %2 = vector.broadcast %1 : vector<2x1x128xf32> to vector<2x16x128xf32>
    %3 = arith.mulf %0, %2 : vector<2x16x128xf32>
    %cst = arith.constant dense<0.000000e+00> : vector<2x16xf32>
    %4 = vector.multi_reduction <add>, %3, %cst [2] : vector<2x16x128xf32> to vector<2x16xf32>
    %5 = vector.shape_cast %4 : vector<2x16xf32> to vector<2x16x1xf32>
    %6 = arith.negf %5 : vector<2x16x1xf32>
    %7 = math.exp %6 : vector<2x16x1xf32>
    %cst_5 = arith.constant 1.000000e+00 : f32
    %8 = vector.broadcast %cst_5 : f32 to vector<2x16x1xf32>
    %9 = arith.addf %8, %7 : vector<2x16x1xf32>
    %10 = arith.divf %8, %9 : vector<2x16x1xf32>
    %cst_6 = arith.constant 1.000000e+00 : f32
    %11 = vector.broadcast %cst_6 : f32 to vector<2x16x1xf32>
    %12 = arith.addf %10, %11 : vector<2x16x1xf32>
    %13 = vector.broadcast %12 : vector<2x16x1xf32> to vector<2x16x128xf32>
    %14 = arith.mulf %0, %13 : vector<2x16x128xf32>
    %cst_7 = arith.constant dense<0.000000e+00> : vector<2x16xf32>
    %15 = vector.multi_reduction <add>, %14, %cst_7 [2] : vector<2x16x128xf32> to vector<2x16xf32>
    %16 = vector.shape_cast %15 : vector<2x16xf32> to vector<2x16x1xf32>
    %cst_8 = arith.constant 7.812500e-03 : f32
    %17 = vector.broadcast %cst_8 : f32 to vector<2x16x1xf32>
    %18 = arith.mulf %16, %17 : vector<2x16x1xf32>
    %19 = arith.mulf %14, %14 : vector<2x16x128xf32>
    %cst_9 = arith.constant dense<0.000000e+00> : vector<2x16xf32>
    %20 = vector.multi_reduction <add>, %19, %cst_9 [2] : vector<2x16x128xf32> to vector<2x16xf32>
    %21 = vector.shape_cast %20 : vector<2x16xf32> to vector<2x16x1xf32>
    %cst_10 = arith.constant 7.812500e-03 : f32
    %22 = vector.broadcast %cst_10 : f32 to vector<2x16x1xf32>
    %23 = arith.mulf %21, %22 : vector<2x16x1xf32>
    %24 = arith.mulf %18, %18 : vector<2x16x1xf32>
    %25 = arith.subf %23, %24 : vector<2x16x1xf32>
    %cst_11 = arith.constant 0.000000e+00 : f32
    %26 = vector.broadcast %cst_11 : f32 to vector<2x16x1xf32>
    %27 = arith.maximumf %25, %26 : vector<2x16x1xf32>
    %28 = vector.broadcast %18 : vector<2x16x1xf32> to vector<2x16x128xf32>
    %29 = arith.subf %14, %28 : vector<2x16x128xf32>
    %cst_12 = arith.constant 9.99999974E-6 : f32
    %30 = vector.broadcast %cst_12 : f32 to vector<2x16x1xf32>
    %31 = arith.addf %27, %30 : vector<2x16x1xf32>
    %32 = math.rsqrt %31 : vector<2x16x1xf32>
    %33 = vector.broadcast %32 : vector<2x16x1xf32> to vector<2x16x128xf32>
    %34 = arith.mulf %29, %33 : vector<2x16x128xf32>
    %c0_13 = arith.constant 0 : index
    %c0_14 = arith.constant 0 : index
    %35 = vector.load %arg4[%c0_13, %c0_14] : memref<2x128xf32, #tpu.memory_space<vmem>>, vector<1x128xf32>
    %36 = vector.shape_cast %35 : vector<1x128xf32> to vector<1x1x128xf32>
    %37 = vector.broadcast %36 : vector<1x1x128xf32> to vector<2x16x128xf32>
    %38 = arith.mulf %34, %37 : vector<2x16x128xf32>
    %c0_15 = arith.constant 0 : index
    %c0_16 = arith.constant 0 : index
    %39 = vector.load %arg5[%c0_15, %c0_16] : memref<2x128xf32, #tpu.memory_space<vmem>>, vector<1x128xf32>
    %40 = vector.shape_cast %39 : vector<1x128xf32> to vector<1x1x128xf32>
    %41 = vector.broadcast %40 : vector<1x1x128xf32> to vector<2x16x128xf32>
    %42 = arith.addf %38, %41 : vector<2x16x128xf32>
    %c0_17 = arith.constant 0 : index
    %c1 = arith.constant 1 : index
    %c0_18 = arith.constant 0 : index
    %43 = vector.load %arg3[%c0_17, %c1, %c0_18] : memref<2x2x128xf32, #tpu.memory_space<vmem>>, vector<2x1x128xf32>
    %44 = vector.broadcast %43 : vector<2x1x128xf32> to vector<2x16x128xf32>
    %45 = arith.mulf %42, %44 : vector<2x16x128xf32>
    %cst_19 = arith.constant dense<0.000000e+00> : vector<2x16xf32>
    %46 = vector.multi_reduction <add>, %45, %cst_19 [2] : vector<2x16x128xf32> to vector<2x16xf32>
    %47 = vector.shape_cast %46 : vector<2x16xf32> to vector<2x16x1xf32>
    %48 = arith.negf %47 : vector<2x16x1xf32>
    %49 = math.exp %48 : vector<2x16x1xf32>
    %cst_20 = arith.constant 1.000000e+00 : f32
    %50 = vector.broadcast %cst_20 : f32 to vector<2x16x1xf32>
    %51 = arith.addf %50, %49 : vector<2x16x1xf32>
    %52 = arith.divf %50, %51 : vector<2x16x1xf32>
    %cst_21 = arith.constant 1.000000e+00 : f32
    %53 = vector.broadcast %cst_21 : f32 to vector<2x16x1xf32>
    %54 = arith.addf %52, %53 : vector<2x16x1xf32>
    %55 = vector.broadcast %54 : vector<2x16x1xf32> to vector<2x16x128xf32>
    %56 = arith.mulf %42, %55 : vector<2x16x128xf32>
    %cst_22 = arith.constant dense<0.000000e+00> : vector<2x16xf32>
    %57 = vector.multi_reduction <add>, %56, %cst_22 [2] : vector<2x16x128xf32> to vector<2x16xf32>
    %58 = vector.shape_cast %57 : vector<2x16xf32> to vector<2x16x1xf32>
    %cst_23 = arith.constant 7.812500e-03 : f32
    %59 = vector.broadcast %cst_23 : f32 to vector<2x16x1xf32>
    %60 = arith.mulf %58, %59 : vector<2x16x1xf32>
    %61 = arith.mulf %56, %56 : vector<2x16x128xf32>
    %cst_24 = arith.constant dense<0.000000e+00> : vector<2x16xf32>
    %62 = vector.multi_reduction <add>, %61, %cst_24 [2] : vector<2x16x128xf32> to vector<2x16xf32>
    %63 = vector.shape_cast %62 : vector<2x16xf32> to vector<2x16x1xf32>
    %cst_25 = arith.constant 7.812500e-03 : f32
    %64 = vector.broadcast %cst_25 : f32 to vector<2x16x1xf32>
    %65 = arith.mulf %63, %64 : vector<2x16x1xf32>
    %66 = arith.mulf %60, %60 : vector<2x16x1xf32>
    %67 = arith.subf %65, %66 : vector<2x16x1xf32>
    %cst_26 = arith.constant 0.000000e+00 : f32
    %68 = vector.broadcast %cst_26 : f32 to vector<2x16x1xf32>
    %69 = arith.maximumf %67, %68 : vector<2x16x1xf32>
    %70 = vector.broadcast %60 : vector<2x16x1xf32> to vector<2x16x128xf32>
    %71 = arith.subf %56, %70 : vector<2x16x128xf32>
    %cst_27 = arith.constant 9.99999974E-6 : f32
    %72 = vector.broadcast %cst_27 : f32 to vector<2x16x1xf32>
    %73 = arith.addf %69, %72 : vector<2x16x1xf32>
    %74 = math.rsqrt %73 : vector<2x16x1xf32>
    %75 = vector.broadcast %74 : vector<2x16x1xf32> to vector<2x16x128xf32>
    %76 = arith.mulf %71, %75 : vector<2x16x128xf32>
    %c1_28 = arith.constant 1 : index
    %c0_29 = arith.constant 0 : index
    %77 = vector.load %arg4[%c1_28, %c0_29] : memref<2x128xf32, #tpu.memory_space<vmem>>, vector<1x128xf32>
    %78 = vector.shape_cast %77 : vector<1x128xf32> to vector<1x1x128xf32>
    %79 = vector.broadcast %78 : vector<1x1x128xf32> to vector<2x16x128xf32>
    %80 = arith.mulf %76, %79 : vector<2x16x128xf32>
    %c1_30 = arith.constant 1 : index
    %c0_31 = arith.constant 0 : index
    %81 = vector.load %arg5[%c1_30, %c0_31] : memref<2x128xf32, #tpu.memory_space<vmem>>, vector<1x128xf32>
    %82 = vector.shape_cast %81 : vector<1x128xf32> to vector<1x1x128xf32>
    %83 = vector.broadcast %82 : vector<1x1x128xf32> to vector<2x16x128xf32>
    %84 = arith.addf %80, %83 : vector<2x16x128xf32>
    %c0_32 = arith.constant 0 : index
    %c0_33 = arith.constant 0 : index
    %c0_34 = arith.constant 0 : index
    %85 = vector.load %arg6[%c0_32, %c0_33, %c0_34] : memref<2x16x128xf32, #tpu.memory_space<vmem>>, vector<2x16x128xf32>
    tpu.vector_store %arg6[%c0_32, %c0_33, %c0_34], %84 {strides = array<i32>} : memref<2x16x128xf32, #tpu.memory_space<vmem>>, vector<2x16x128xf32>,
    return
  }
  func.func @transform_0(%arg0: i32, %arg1: i32) -> (i32, i32, i32) {
    %c0_i32 = arith.constant 0 : i32
    %c0_i32_0 = arith.constant 0 : i32
    return %arg0, %arg1, %c0_i32 : i32, i32, i32
  }
  func.func @transform_1(%arg0: i32, %arg1: i32) -> (i32, i32, i32) {
    %c0_i32 = arith.constant 0 : i32
    %c0_i32_0 = arith.constant 0 : i32
    %c0_i32_1 = arith.constant 0 : i32
    return %arg0, %c0_i32, %c0_i32_0 : i32, i32, i32
  }
  func.func @transform_2(%arg0: i32, %arg1: i32) -> (i32, i32) {
    %c0_i32 = arith.constant 0 : i32
    %c0_i32_0 = arith.constant 0 : i32
    %c0_i32_1 = arith.constant 0 : i32
    return %c0_i32, %c0_i32_0 : i32, i32
  }
  func.func @transform_3(%arg0: i32, %arg1: i32) -> (i32, i32) {
    %c0_i32 = arith.constant 0 : i32
    %c0_i32_0 = arith.constant 0 : i32
    %c0_i32_1 = arith.constant 0 : i32
    return %c0_i32, %c0_i32_0 : i32, i32
  }
  func.func @transform_4(%arg0: i32, %arg1: i32) -> (i32, i32, i32) {
    %c0_i32 = arith.constant 0 : i32
    %c0_i32_0 = arith.constant 0 : i32
    return %arg0, %arg1, %c0_i32 : i32, i32, i32
  }
}

</mosaic_0001>

<llo_original>
// kernel: tpu_custom_call.1
$region0: #{tpu_custom_call.1}
  #allocation0 [shape = 'u32[]', space=smem, size = 0x4, offset = 0x4, fixed_abs, tag = 'smem constant byte address 0x4 - core index']
  #allocation1 [shape = 'u32[144,128]{1,0:T(1,128)}', space=vmem, size = 0x12000, scoped, tag = 'internal scratch']
  %s0 = inlined_call_operand.hbm [shape: f32[8,16,128], index: 0, kind: input, shape index: {}]
  %s1 = inlined_call_operand.hbm [shape: f32[8,2,128], index: 1, kind: input, shape index: {}]
  %s2 = inlined_call_operand.vmem [shape: f32[2,128], index: 2, kind: input, shape index: {}]
  %s3 = inlined_call_operand.vmem [shape: f32[2,128], index: 3, kind: input, shape index: {}]
  %s4 = inlined_call_operand.hbm [shape: f32[8,16,128], index: 4, kind: output, shape index: {}]
  %s5 = sld [smem:[#allocation0]]
  $region57: #{tpu_custom_call.1} parent=0
    _
  %s7 = ssub.s32 1, %s5
  %s8 = scalar_select 0, %s7, %s5
  $region1: #{tpu_custom_call.1} parent=0
    #allocation2 [shape = 'u8[32768]{0}', space=vmem, size = 0x8000, scoped, tag = 'input window, operand 0']
    #allocation3 [shape = 's32[2]{0}', space=sflag, size = 0x8, scoped, tag = 'scoped memory for tpu_custom_call.1']
    #allocation4 [shape = 's32[2]{0}', space=sflag, size = 0x8, scoped, tag = 'scoped memory for tpu_custom_call.1']
    #allocation5 [shape = 'u8[4096]{0}', space=vmem, size = 0x1000, scoped, tag = 'input window, operand 1']
    #allocation6 [shape = 's32[2]{0}', space=sflag, size = 0x8, scoped, tag = 'scoped memory for tpu_custom_call.1']
    #allocation7 [shape = 'u8[32768]{0}', space=vmem, size = 0x8000, scoped, tag = 'output window, operand 0']
    %9 = vsyncpa [#allocation3], 0
    %s10 = scalar_lea.sflag [#allocation3], 1
    %11 = vsyncpa %s10, 0
    %12 = vsyncpa [#allocation6], 0
    %s13 = scalar_lea.sflag [#allocation6], 1
    %14 = vsyncpa %s13, 0
    %15 = vsyncpa [#allocation4], 0
    %s16 = scalar_lea.sflag [#allocation4], 1
    %17 = vsyncpa %s16, 0
    loop: start=0, step=1, limit=6
    $region2: #{tpu_custom_call.1} parent=1 // loop_pre_header
      _
    $region3: #{tpu_custom_call.1} parent=1 // loop_header
      %s19 = sphi 0, %s23
      %p20 = scmp.ge.s32.totalorder %s19, 6
      %s26 = sphi 0, %s38
      %s27 = sphi 0, %s34
      %s28 = sphi 0, %s26
      %s29 = sphi 0, %s27
      %s30 = sphi 0, %s28
      %s31 = sphi 0, %s29
      %s43 = sphi 0, %s45
      %s46 = sphi 0, %s43
      %s47 = sphi 0, %s46
      %s63 = sphi 0, %s47
      %s69 = sphi 0, %s71
      %s72 = sphi 0, %s69
      %s73 = sphi 0, %s72
      %s89 = sphi 0, %s73
      %s93 = sphi 0, %s93
      %s95 = sphi 0, %s93
      %s96 = sphi 0, %s95
      %s110 = sphi 0, %s96
      %s114 = sphi 0, %s114
      %s116 = sphi 0, %s114
      %s117 = sphi 0, %s116
      %s131 = sphi 0, %s117
      %s139 = sphi 0, %s141
      %s142 = sphi 0, %s139
      %s143 = sphi 0, %s142
      %s159 = sphi 0, %s143
    $region4: #{tpu_custom_call.1} parent=1 // loop_header_branch
      %22 = sbr.rel (%p20) target = $region8
    $region5: #{tpu_custom_call.1} parent=1 // loop_body
      %s24 = ssub.s32 %s19, 1
      %s25 = ssub.s32 %s19, 2
      %s32 = sadd.s32 1, %s27
      %p33 = scmp.ge.s32.totalorder %s32, 1
      %s34 = scalar_select %p33, 0, %s32
      %s35 = sadd.s32 1, %s26
      %s36 = scalar_select %p33, %s35, %s26
      %p37 = scmp.ge.s32.totalorder %s36, 4
      %s38 = scalar_select %p37, 0, %s36
      %s39 = ssub.s32 %s26, %s38
      %s40 = ssub.s32 %s27, %s34
      %s41 = sor.u32 %s39, %s40
      %p42 = scmp.eq.s32.totalorder %s41, 0
      %s44 = sadd.s32 %s43, 1
      %s45 = scalar_select %p42, %s43, %s44
      %p48 = pneg %p42
      %p49 = scmp.eq.s32.totalorder %s19, 3
      %p50 = por %p48, %p49
      %p51 = scmp.ne.s32.totalorder %s43, %s46
      %p52 = scmp.eq.s32.totalorder %s19, 0
      %p53 = por %p51, %p52
      %p54 = scmp.ne.s32.totalorder %s43, %s46
      %p55 = scmp.eq.s32.totalorder %s24, 3
      %p56 = por %p54, %p55
      %p57 = scmp.ne.s32.totalorder %s46, %s47
      %p58 = scmp.eq.s32.totalorder %s24, 0
      %p59 = por %p57, %p58
      %p60 = scmp.ne.s32.totalorder %s46, %s47
      %p61 = scmp.eq.s32.totalorder %s25, 3
      %p62 = por %p60, %p61
      %p64 = scmp.ne.s32.totalorder %s47, %s63
      %p65 = scmp.eq.s32.totalorder %s25, 0
      %p66 = por %p64, %p65
      %s67 = ssub.s32 %s26, %s38
      %p68 = scmp.eq.s32.totalorder %s67, 0
      %s70 = sadd.s32 %s69, 1
      %s71 = scalar_select %p68, %s69, %s70
      %p74 = pneg %p68
      %p75 = scmp.eq.s32.totalorder %s19, 3
      %p76 = por %p74, %p75
      %p77 = scmp.ne.s32.totalorder %s69, %s72
      %p78 = scmp.eq.s32.totalorder %s19, 0
      %p79 = por %p77, %p78
      %p80 = scmp.ne.s32.totalorder %s69, %s72
      %p81 = scmp.eq.s32.totalorder %s24, 3
      %p82 = por %p80, %p81
      %p83 = scmp.ne.s32.totalorder %s72, %s73
      %p84 = scmp.eq.s32.totalorder %s24, 0
      %p85 = por %p83, %p84
      %p86 = scmp.ne.s32.totalorder %s72, %s73
      %p87 = scmp.eq.s32.totalorder %s25, 3
      %p88 = por %p86, %p87
      %p90 = scmp.ne.s32.totalorder %s73, %s89
      %p91 = scmp.eq.s32.totalorder %s25, 0
      %p92 = por %p90, %p91
      %s94 = sadd.s32 %s93, 1
      %p97 = scmp.eq.s32.totalorder %s19, 3
      %p98 = scmp.ne.s32.totalorder %s93, %s95
      %p99 = scmp.eq.s32.totalorder %s19, 0
      %p100 = por %p98, %p99
      %p101 = scmp.ne.s32.totalorder %s93, %s95
      %p102 = scmp.eq.s32.totalorder %s24, 3
      %p103 = por %p101, %p102
      %p104 = scmp.ne.s32.totalorder %s95, %s96
      %p105 = scmp.eq.s32.totalorder %s24, 0
      %p106 = por %p104, %p105
      %p107 = scmp.ne.s32.totalorder %s95, %s96
      %p108 = scmp.eq.s32.totalorder %s25, 3
      %p109 = por %p107, %p108
      %p111 = scmp.ne.s32.totalorder %s96, %s110
      %p112 = scmp.eq.s32.totalorder %s25, 0
      %p113 = por %p111, %p112
      %s115 = sadd.s32 %s114, 1
      %p118 = scmp.eq.s32.totalorder %s19, 3
      %p119 = scmp.ne.s32.totalorder %s114, %s116
      %p120 = scmp.eq.s32.totalorder %s19, 0
      %p121 = por %p119, %p120
      %p122 = scmp.ne.s32.totalorder %s114, %s116
      %p123 = scmp.eq.s32.totalorder %s24, 3
      %p124 = por %p122, %p123
      %p125 = scmp.ne.s32.totalorder %s116, %s117
      %p126 = scmp.eq.s32.totalorder %s24, 0
      %p127 = por %p125, %p126
      %p128 = scmp.ne.s32.totalorder %s116, %s117
      %p129 = scmp.eq.s32.totalorder %s25, 3
      %p130 = por %p128, %p129
      %p132 = scmp.ne.s32.totalorder %s117, %s131
      %p133 = scmp.eq.s32.totalorder %s25, 0
      %p134 = por %p132, %p133
      %s135 = ssub.s32 %s26, %s38
      %s136 = ssub.s32 %s27, %s34
      %s137 = sor.u32 %s135, %s136
      %p138 = scmp.eq.s32.totalorder %s137, 0
      %s140 = sadd.s32 %s139, 1
      %s141 = scalar_select %p138, %s139, %s140
      %p144 = pneg %p138
      %p145 = scmp.eq.s32.totalorder %s19, 3
      %p146 = por %p144, %p145
      %p147 = scmp.ne.s32.totalorder %s139, %s142
      %p148 = scmp.eq.s32.totalorder %s19, 0
      %p149 = por %p147, %p148
      %p150 = scmp.ne.s32.totalorder %s139, %s142
      %p151 = scmp.eq.s32.totalorder %s24, 3
      %p152 = por %p150, %p151
      %p153 = scmp.ne.s32.totalorder %s142, %s143
      %p154 = scmp.eq.s32.totalorder %s24, 0
      %p155 = por %p153, %p154
      %p156 = scmp.ne.s32.totalorder %s142, %s143
      %p157 = scmp.eq.s32.totalorder %s25, 3
      %p158 = por %p156, %p157
      %p160 = scmp.ne.s32.totalorder %s143, %s159
      %p161 = scmp.eq.s32.totalorder %s25, 0
      %p162 = por %p160, %p161
      %p163 = scmp.le.s32.totalorder 1, %s19
      %p164 = scmp.lt.s32.totalorder %s19, 5
      %p165 = pnand %p163, %p164
      %p166 = pneg %p165
      // Predicated region
      $region9: #{tpu_custom_call.1} parent=5 // pred_check
        _
      $region10: #{tpu_custom_call.1} parent=5 // pred_check_branch
        %168 = sbr.rel (%p165) target = $region12
      $region11: #{tpu_custom_call.1} parent=5 // pred_region
        %s169 = ssub.s32 %s19, 1
        // Predicated region
        $region13: #{tpu_custom_call.1} parent=11 // pred_check
          %p170 = pneg %p106
        $region14: #{tpu_custom_call.1} parent=11 // pred_check_branch
          %172 = sbr.rel (%p170) target = $region16
        $region15: #{tpu_custom_call.1} parent=11 // pred_region
          _
        $region16: #{tpu_custom_call.1} parent=11 // pred_fallthru
          _
        // Predicated region
        $region17: #{tpu_custom_call.1} parent=11 // pred_check
          %p173 = pneg %p127
        $region18: #{tpu_custom_call.1} parent=11 // pred_check_branch
          %175 = sbr.rel (%p173) target = $region20
        $region19: #{tpu_custom_call.1} parent=11 // pred_region
          _
        $region20: #{tpu_custom_call.1} parent=11 // pred_fallthru
          _
      $region12: #{tpu_custom_call.1} parent=5 // pred_fallthru
        _
      %p176 = scmp.lt.s32.totalorder %s19, 4
      // Predicated region
      $region21: #{tpu_custom_call.1} parent=5 // pred_check
        %p177 = pneg %p176
      $region22: #{tpu_custom_call.1} parent=5 // pred_check_branch
        %179 = sbr.rel (%p177) target = $region24
      $region23: #{tpu_custom_call.1} parent=5 // pred_region
        // Predicated region
        $region25: #{tpu_custom_call.1} parent=23 // pred_check
          %p180 = pneg %p53
        $region26: #{tpu_custom_call.1} parent=23 // pred_check_branch
          %182 = sbr.rel (%p180) target = $region28
        $region27: #{tpu_custom_call.1} parent=23 // pred_region
          %s183 = sand.u32 %s43, 1
          %s184 = scalar_lea.sflag [#allocation3], %s183
          %s185 = sand.u32 %s43, 1
          %s186 = smul.addr %s185, 32
          %s187 = scalar_lea.vmem [#allocation2], %s186
          %s188 = smul.u32 2, %s26
          %s189 = smul.u32 2, %s27
          %s191 = ssub.s32 512, 512
          %192 = vsyncadd %s184, %s191
          %s193 = smul.addr %s188, 2
          %s194 = sadd.s32 %s189, %s193
          %s195 = smul.addr %s194, 128
          %s196 = scalar_lea.hbm %s0, %s195
          %s197 = sshll.u32 %s187, 4
          %s198 = int_to_ptr.vmem [resolvable:$true] %s197
          %203 = dma.hbm_to_vmem [thread:$0]  %s196, 512, %s198, %s184, 128, 128, 8
        $region28: #{tpu_custom_call.1} parent=23 // pred_fallthru
          _
        // Predicated region
        $region29: #{tpu_custom_call.1} parent=23 // pred_check
          %p204 = pneg %p79
        $region30: #{tpu_custom_call.1} parent=23 // pred_check_branch
          %206 = sbr.rel (%p204) target = $region32
        $region31: #{tpu_custom_call.1} parent=23 // pred_region
          %s207 = sand.u32 %s69, 1
          %s208 = scalar_lea.sflag [#allocation6], %s207
          %s209 = sand.u32 %s69, 1
          %s210 = smul.addr %s209, 4
          %s211 = scalar_lea.vmem [#allocation5], %s210
          %s212 = smul.u32 2, %s26
          %s214 = ssub.s32 64, 64
          %215 = vsyncadd %s208, %s214
          %s216 = smul.addr %s212, 32
          %s217 = scalar_lea.hbm %s1, %s216
          %s218 = sshll.u32 %s211, 4
          %s219 = int_to_ptr.vmem [resolvable:$true] %s218
          %224 = dma.hbm_to_vmem [thread:$0]  %s217, 64, %s219, %s208, 32, 32, 2
        $region32: #{tpu_custom_call.1} parent=23 // pred_fallthru
          _
      $region24: #{tpu_custom_call.1} parent=5 // pred_fallthru
        _
      %p225 = scmp.le.s32.totalorder 1, %s19
      %p226 = scmp.lt.s32.totalorder %s19, 5
      %p227 = pnand %p225, %p226
      %p228 = pneg %p227
      // Predicated region
      $region33: #{tpu_custom_call.1} parent=5 // pred_check
        _
      $region34: #{tpu_custom_call.1} parent=5 // pred_check_branch
        %230 = sbr.rel (%p227) target = $region36
      $region35: #{tpu_custom_call.1} parent=5 // pred_region
        %s231 = ssub.s32 %s19, 1
        %s232 = sand.u32 %s46, 1
        %s233 = scalar_lea.sflag [#allocation3], %s232
        %s234 = sand.u32 %s46, 1
        %s235 = smul.addr %s234, 32
        %s236 = scalar_lea.vmem [#allocation2], %s235
        // Predicated region
        $region37: #{tpu_custom_call.1} parent=35 // pred_check
          %p237 = pneg %p59
        $region38: #{tpu_custom_call.1} parent=35 // pred_check_branch
          %239 = sbr.rel (%p237) target = $region40
        $region39: #{tpu_custom_call.1} parent=35 // pred_region
          %240 = dma.done %s233, 512
        $region40: #{tpu_custom_call.1} parent=35 // pred_fallthru
          _
        %s241 = sand.u32 %s72, 1
        %s242 = scalar_lea.sflag [#allocation6], %s241
        %s243 = sand.u32 %s72, 1
        %s244 = smul.addr %s243, 4
        %s245 = scalar_lea.vmem [#allocation5], %s244
        // Predicated region
        $region41: #{tpu_custom_call.1} parent=35 // pred_check
          %p246 = pneg %p85
        $region42: #{tpu_custom_call.1} parent=35 // pred_check_branch
          %248 = sbr.rel (%p246) target = $region44
        $region43: #{tpu_custom_call.1} parent=35 // pred_region
          %249 = dma.done %s242, 64
        $region44: #{tpu_custom_call.1} parent=35 // pred_fallthru
          _
        %s250 = sand.u32 %s46, 1
        %s251 = scalar_lea.sflag [#allocation3], %s250
        %s252 = sand.u32 %s46, 1
        %s253 = smul.addr %s252, 32
        %s254 = scalar_lea.vmem [#allocation2], %s253
        %p255 = pneg %p59
        %p256 = pneg %p56
        %s257 = sand.u32 %s72, 1
        %s258 = scalar_lea.sflag [#allocation6], %s257
        %s259 = sand.u32 %s72, 1
        %s260 = smul.addr %s259, 4
        %s261 = scalar_lea.vmem [#allocation5], %s260
        %p262 = pneg %p85
        %p263 = pneg %p82
        %p264 = pneg %p106
        %p265 = pneg %p103
        %p266 = pneg %p127
        %p267 = pneg %p124
        %p268 = pneg %p155
        %p269 = pneg %p152
        %s270 = sand.u32 %s142, 1
        %s271 = scalar_lea.sflag [#allocation4], %s270
        %s272 = sand.u32 %s142, 1
        %s273 = smul.addr %s272, 32
        %s274 = scalar_lea.vmem [#allocation7], %s273
        %s275 = smul.u32 2, %s28
        %s276 = smul.u32 2, %s29
        %s277 = smul.u32 2, %s28
        %s278 = smul.u32 2, %s28
        %s279 = smul.u32 2, %s29
        %v280 = vld [vmem:[%s236] sm:$0xff]
        %v281 = vld [vmem:[%s236 + $0x8] sm:$0xff]
        %v282 = vld [vmem:[%s236 + $0x10] sm:$0xff]
        %v283 = vld [vmem:[%s236 + $0x18] sm:$0xff]
        %v284 = vld [vmem:[%s245] sm:$0x1]
        %v285 = vld [vmem:[%s245 + $0x2] sm:$0x1]
        %v286 = vlaneseq
        %v287 = vshrl.u32 %v286, 7
        %v288 = vsub.s32 0, %v287
        %v289 = vrot.slane %v284, %v288
        %v290 = vlaneseq
        %v291 = vshrl.u32 %v290, 7
        %v292 = vsub.s32 0, %v291
        %v293 = vrot.slane %v285, %v292
        %v294 = vmul.f32 %v280, %v289
        %v295 = vmul.f32 %v281, %v289
        %v296 = vmul.f32 %v282, %v293
        %v297 = vmul.f32 %v283, %v293
        %298 = vadd.xlane.f32.xlu0 %v294
        %v299 = vpop.xlane.xlu0 %298
        %300 = vadd.xlane.f32.xlu0 %v295
        %v301 = vpop.xlane.xlu0 %300
        %302 = vadd.xlane.f32.xlu0 %v296
        %v303 = vpop.xlane.xlu0 %302
        %304 = vadd.xlane.f32.xlu0 %v297
        %v305 = vpop.xlane.xlu0 %304
        %v306 = vxor.u32 %v299, 2147483648
        %v307 = vxor.u32 %v301, 2147483648
        %v308 = vxor.u32 %v303, 2147483648
        %v309 = vxor.u32 %v305, 2147483648
        %v310 = vmul.f32 %v306, 1.442695
        %v311 = vpow.pop %v310
        %v312 = vmul.f32 %v307, 1.442695
        %v313 = vpow.pop %v312
        %v314 = vmul.f32 %v308, 1.442695
        %v315 = vpow.pop %v314
        %v316 = vmul.f32 %v309, 1.442695
        %v317 = vpow.pop %v316
        %v318 = vadd.f32 %v311, 1.0
        %v319 = vadd.f32 %v313, 1.0
        %v320 = vadd.f32 %v315, 1.0
        %v321 = vadd.f32 %v317, 1.0
        %v322 = vrcp.pop %v318
        %v323 = vmul.f32 1.0, %v322
        %v324 = vrcp.pop %v319
        %v325 = vmul.f32 1.0, %v324
        %v326 = vrcp.pop %v320
        %v327 = vmul.f32 1.0, %v326
        %v328 = vrcp.pop %v321
        %v329 = vmul.f32 1.0, %v328
        %v330 = vadd.f32 %v323, 1.0
        %v331 = vadd.f32 %v325, 1.0
        %v332 = vadd.f32 %v327, 1.0
        %v333 = vadd.f32 %v329, 1.0
        %v334 = vmul.f32 %v280, %v330
        %v335 = vmul.f32 %v281, %v331
        %v336 = vmul.f32 %v282, %v332
        %v337 = vmul.f32 %v283, %v333
        %338 = vadd.xlane.f32.xlu0 %v334
        %v339 = vpop.xlane.xlu0 %338
        %340 = vadd.xlane.f32.xlu0 %v335
        %v341 = vpop.xlane.xlu0 %340
        %342 = vadd.xlane.f32.xlu0 %v336
        %v343 = vpop.xlane.xlu0 %342
        %344 = vadd.xlane.f32.xlu0 %v337
        %v345 = vpop.xlane.xlu0 %344
        %v346 = vmul.f32 %v339, 0.0078125
        %v347 = vmul.f32 %v341, 0.0078125
        %v348 = vmul.f32 %v343, 0.0078125
        %v349 = vmul.f32 %v345, 0.0078125
        %v350 = vmul.f32 %v334, %v334
        %v351 = vmul.f32 %v335, %v335
        %v352 = vmul.f32 %v336, %v336
        %v353 = vmul.f32 %v337, %v337
        %354 = vadd.xlane.f32.xlu0 %v350
        %v355 = vpop.xlane.xlu0 %354
        %356 = vadd.xlane.f32.xlu0 %v351
        %v357 = vpop.xlane.xlu0 %356
        %358 = vadd.xlane.f32.xlu0 %v352
        %v359 = vpop.xlane.xlu0 %358
        %360 = vadd.xlane.f32.xlu0 %v353
        %v361 = vpop.xlane.xlu0 %360
        %v362 = vmul.f32 %v355, 0.0078125
        %v363 = vmul.f32 %v357, 0.0078125
        %v364 = vmul.f32 %v359, 0.0078125
        %v365 = vmul.f32 %v361, 0.0078125
        %v366 = vmul.f32 %v346, %v346
        %v367 = vmul.f32 %v347, %v347
        %v368 = vmul.f32 %v348, %v348
        %v369 = vmul.f32 %v349, %v349
        %v370 = vsub.f32 %v362, %v366
        %v371 = vsub.f32 %v363, %v367
        %v372 = vsub.f32 %v364, %v368
        %v373 = vsub.f32 %v365, %v369
        %v374 = vmax.f32 %v370, 0.0
        %v375 = vmax.f32 %v371, 0.0
        %v376 = vmax.f32 %v372, 0.0
        %v377 = vmax.f32 %v373, 0.0
        %v378 = vsub.f32 %v334, %v346
        %v379 = vsub.f32 %v335, %v347
        %v380 = vsub.f32 %v336, %v348
        %v381 = vsub.f32 %v337, %v349
        %v382 = vadd.f32 %v374, 1e-05
        %v383 = vadd.f32 %v375, 1e-05
        %v384 = vadd.f32 %v376, 1e-05
        %v385 = vadd.f32 %v377, 1e-05
        %v386 = vrsqrt.pop %v382
        %v387 = vrsqrt.pop %v383
        %v388 = vrsqrt.pop %v384
        %v389 = vrsqrt.pop %v385
        %v390 = vmul.f32 %v378, %v386
        %v391 = vmul.f32 %v379, %v387
        %v392 = vmul.f32 %v380, %v388
        %v393 = vmul.f32 %v381, %v389
        %v394 = vld [vmem:[%s2] sm:$0x1]
        %v395 = vlaneseq
        %v396 = vshrl.u32 %v395, 7
        %v397 = vsub.s32 0, %v396
        %v398 = vrot.slane %v394, %v397
        %v399 = vmul.f32 %v390, %v398
        %v400 = vmul.f32 %v391, %v398
        %v401 = vmul.f32 %v392, %v398
        %v402 = vmul.f32 %v393, %v398
        %v403 = vld [vmem:[%s3] sm:$0x1]
        %v404 = vlaneseq
        %v405 = vshrl.u32 %v404, 7
        %v406 = vsub.s32 0, %v405
        %v407 = vrot.slane %v403, %v406
        %v408 = vadd.f32 %v399, %v407
        %v409 = vadd.f32 %v400, %v407
        %v410 = vadd.f32 %v401, %v407
        %v411 = vadd.f32 %v402, %v407
        %v412 = vld [vmem:[%s245 + $0x1] sm:$0x1]
        %v413 = vld [vmem:[%s245 + $0x3] sm:$0x1]
        %v414 = vlaneseq
        %v415 = vshrl.u32 %v414, 7
        %v416 = vsub.s32 0, %v415
        %v417 = vrot.slane %v412, %v416
        %v418 = vlaneseq
        %v419 = vshrl.u32 %v418, 7
        %v420 = vsub.s32 0, %v419
        %v421 = vrot.slane %v413, %v420
        %v422 = vmul.f32 %v408, %v417
        %v423 = vmul.f32 %v409, %v417
        %v424 = vmul.f32 %v410, %v421
        %v425 = vmul.f32 %v411, %v421
        %426 = vadd.xlane.f32.xlu0 %v422
        %v427 = vpop.xlane.xlu0 %426
        %428 = vadd.xlane.f32.xlu0 %v423
        %v429 = vpop.xlane.xlu0 %428
        %430 = vadd.xlane.f32.xlu0 %v424
        %v431 = vpop.xlane.xlu0 %430
        %432 = vadd.xlane.f32.xlu0 %v425
        %v433 = vpop.xlane.xlu0 %432
        %v434 = vxor.u32 %v427, 2147483648
        %v435 = vxor.u32 %v429, 2147483648
        %v436 = vxor.u32 %v431, 2147483648
        %v437 = vxor.u32 %v433, 2147483648
        %v438 = vmul.f32 %v434, 1.442695
        %v439 = vpow.pop %v438
        %v440 = vmul.f32 %v435, 1.442695
        %v441 = vpow.pop %v440
        %v442 = vmul.f32 %v436, 1.442695
        %v443 = vpow.pop %v442
        %v444 = vmul.f32 %v437, 1.442695
        %v445 = vpow.pop %v444
        %v446 = vadd.f32 %v439, 1.0
        %v447 = vadd.f32 %v441, 1.0
        %v448 = vadd.f32 %v443, 1.0
        %v449 = vadd.f32 %v445, 1.0
        %v450 = vrcp.pop %v446
        %v451 = vmul.f32 1.0, %v450
        %v452 = vrcp.pop %v447
        %v453 = vmul.f32 1.0, %v452
        %v454 = vrcp.pop %v448
        %v455 = vmul.f32 1.0, %v454
        %v456 = vrcp.pop %v449
        %v457 = vmul.f32 1.0, %v456
        %v458 = vadd.f32 %v451, 1.0
        %v459 = vadd.f32 %v453, 1.0
        %v460 = vadd.f32 %v455, 1.0
        %v461 = vadd.f32 %v457, 1.0
        %v462 = vmul.f32 %v408, %v458
        %v463 = vmul.f32 %v409, %v459
        %v464 = vmul.f32 %v410, %v460
        %v465 = vmul.f32 %v411, %v461
        %466 = vadd.xlane.f32.xlu0 %v462
        %v467 = vpop.xlane.xlu0 %466
        %468 = vadd.xlane.f32.xlu0 %v463
        %v469 = vpop.xlane.xlu0 %468
        %470 = vadd.xlane.f32.xlu0 %v464
        %v471 = vpop.xlane.xlu0 %470
        %472 = vadd.xlane.f32.xlu0 %v465
        %v473 = vpop.xlane.xlu0 %472
        %v474 = vmul.f32 %v467, 0.0078125
        %v475 = vmul.f32 %v469, 0.0078125
        %v476 = vmul.f32 %v471, 0.0078125
        %v477 = vmul.f32 %v473, 0.0078125
        %v478 = vmul.f32 %v462, %v462
        %v479 = vmul.f32 %v463, %v463
        %v480 = vmul.f32 %v464, %v464
        %v481 = vmul.f32 %v465, %v465
        %482 = vadd.xlane.f32.xlu0 %v478
        %v483 = vpop.xlane.xlu0 %482
        %484 = vadd.xlane.f32.xlu0 %v479
        %v485 = vpop.xlane.xlu0 %484
        %486 = vadd.xlane.f32.xlu0 %v480
        %v487 = vpop.xlane.xlu0 %486
        %488 = vadd.xlane.f32.xlu0 %v481
        %v489 = vpop.xlane.xlu0 %488
        %v490 = vmul.f32 %v483, 0.0078125
        %v491 = vmul.f32 %v485, 0.0078125
        %v492 = vmul.f32 %v487, 0.0078125
        %v493 = vmul.f32 %v489, 0.0078125
        %v494 = vmul.f32 %v474, %v474
        %v495 = vmul.f32 %v475, %v475
        %v496 = vmul.f32 %v476, %v476
        %v497 = vmul.f32 %v477, %v477
        %v498 = vsub.f32 %v490, %v494
        %v499 = vsub.f32 %v491, %v495
        %v500 = vsub.f32 %v492, %v496
        %v501 = vsub.f32 %v493, %v497
        %v502 = vmax.f32 %v498, 0.0
        %v503 = vmax.f32 %v499, 0.0
        %v504 = vmax.f32 %v500, 0.0
        %v505 = vmax.f32 %v501, 0.0
        %v506 = vsub.f32 %v462, %v474
        %v507 = vsub.f32 %v463, %v475
        %v508 = vsub.f32 %v464, %v476
        %v509 = vsub.f32 %v465, %v477
        %v510 = vadd.f32 %v502, 1e-05
        %v511 = vadd.f32 %v503, 1e-05
        %v512 = vadd.f32 %v504, 1e-05
        %v513 = vadd.f32 %v505, 1e-05
        %v514 = vrsqrt.pop %v510
        %v515 = vrsqrt.pop %v511
        %v516 = vrsqrt.pop %v512
        %v517 = vrsqrt.pop %v513
        %v518 = vmul.f32 %v506, %v514
        %v519 = vmul.f32 %v507, %v515
        %v520 = vmul.f32 %v508, %v516
        %v521 = vmul.f32 %v509, %v517
        %v522 = vld [vmem:[%s2 + $0x1] sm:$0x1]
        %v523 = vlaneseq
        %v524 = vshrl.u32 %v523, 7
        %v525 = vsub.s32 0, %v524
        %v526 = vrot.slane %v522, %v525
        %v527 = vmul.f32 %v518, %v526
        %v528 = vmul.f32 %v519, %v526
        %v529 = vmul.f32 %v520, %v526
        %v530 = vmul.f32 %v521, %v526
        %v531 = vld [vmem:[%s3 + $0x1] sm:$0x1]
        %v532 = vlaneseq
        %v533 = vshrl.u32 %v532, 7
        %v534 = vsub.s32 0, %v533
        %v535 = vrot.slane %v531, %v534
        %v536 = vadd.f32 %v527, %v535
        %v537 = vadd.f32 %v528, %v535
        %v538 = vadd.f32 %v529, %v535
        %v539 = vadd.f32 %v530, %v535
        %540 = vst [vmem:[%s274] sm:$0xff] %v536
        %541 = vst [vmem:[%s274 + $0x8] sm:$0xff] %v537
        %542 = vst [vmem:[%s274 + $0x10] sm:$0xff] %v538
        %543 = vst [vmem:[%s274 + $0x18] sm:$0xff] %v539
        %s544 = sand.u32 %s142, 1
        %s545 = scalar_lea.sflag [#allocation4], %s544
        %s546 = sand.u32 %s142, 1
        %s547 = smul.addr %s546, 32
        %s548 = scalar_lea.vmem [#allocation7], %s547
        // Predicated region
        $region45: #{tpu_custom_call.1} parent=35 // pred_check
          %p549 = pneg %p152
        $region46: #{tpu_custom_call.1} parent=35 // pred_check_branch
          %551 = sbr.rel (%p549) target = $region48
        $region47: #{tpu_custom_call.1} parent=35 // pred_region
          %s552 = smul.u32 2, %s28
          %s553 = smul.u32 2, %s29
          %s555 = ssub.s32 512, 512
          %556 = vsyncadd %s545, %s555
          %s557 = smul.addr %s552, 2
          %s558 = sadd.s32 %s553, %s557
          %s559 = smul.addr %s558, 128
          %s560 = scalar_lea.hbm %s4, %s559
          %s561 = sshll.u32 %s548, 4
          %s562 = int_to_ptr.vmem [resolvable:$true] %s561
          %567 = dma.vmem_to_hbm [thread:$0]  %s562, 512, %s560, %s545, 128, 128, 8
        $region48: #{tpu_custom_call.1} parent=35 // pred_fallthru
          _
      $region36: #{tpu_custom_call.1} parent=5 // pred_fallthru
        _
      %p568 = scmp.le.s32.totalorder 2, %s19
      // Predicated region
      $region49: #{tpu_custom_call.1} parent=5 // pred_check
        %p569 = pneg %p568
      $region50: #{tpu_custom_call.1} parent=5 // pred_check_branch
        %571 = sbr.rel (%p569) target = $region52
      $region51: #{tpu_custom_call.1} parent=5 // pred_region
        %s572 = ssub.s32 %s19, 2
        // Predicated region
        $region53: #{tpu_custom_call.1} parent=51 // pred_check
          %p573 = pneg %p158
        $region54: #{tpu_custom_call.1} parent=51 // pred_check_branch
          %575 = sbr.rel (%p573) target = $region56
        $region55: #{tpu_custom_call.1} parent=51 // pred_region
          %s576 = sand.u32 %s143, 1
          %s577 = scalar_lea.sflag [#allocation4], %s576
          %s578 = sand.u32 %s143, 1
          %s579 = smul.addr %s578, 32
          %s580 = scalar_lea.vmem [#allocation7], %s579
          %581 = dma.done %s577, 512
        $region56: #{tpu_custom_call.1} parent=51 // pred_fallthru
          _
      $region52: #{tpu_custom_call.1} parent=5 // pred_fallthru
        _
    $region6: #{tpu_custom_call.1} parent=1 // loop_footer
      %s23 = sadd.s32 1, %s19
    $region7: #{tpu_custom_call.1} parent=1 // loop_footer_branch
      %18 = sbr.rel target = $region3
    $region8: #{tpu_custom_call.1} parent=1 // loop_exit
      _
    %582 = vsyncpa [#allocation3], 1
    %s583 = scalar_lea.sflag [#allocation3], 1
    %584 = vsyncpa %s583, 1
    %585 = vsyncpa [#allocation6], 1
    %s586 = scalar_lea.sflag [#allocation6], 1
    %587 = vsyncpa %s586, 1
    %588 = vsyncpa [#allocation4], 1
    %s589 = scalar_lea.sflag [#allocation4], 1
    %590 = vsyncpa %s589, 1

</llo_original>
